<compile_context>
chip_gen: v6e
topology: v6e:2x2x1
jax: 0.10.0
libtpu: 0.0.40
codegen_flags: <defaults>
</compile_context>

<pallas_src>
import jax
import jax.numpy as jnp
from jax import lax
from jax.experimental import pallas as pl
from jax.experimental.pallas import tpu as pltpu

BN_EPS = 1e-5


def autoencoder_kernel(
    x_ref,
    we_ref, auxe_ref,     # encoder layer : weight [D, ENC],   aux [3, ENC] = (bias, gamma, beta)
    wl_ref, auxl_ref,     # latent  layer : weight [ENC, LAT], aux [3, LAT]
    wd_ref, auxd_ref,     # decoder layer : weight [LAT, DEC], aux [3, DEC]
    wo_ref, bo_ref,       # output  layer : weight [DEC, D],   bias [1, D]  (no batchnorm)
    out_ref,              # packed output : [B, LAT + D] = [ latent | output ]
):
    lat_dim = wl_ref.shape[1]

    def lin_bn_relu(h, w_ref, aux_ref):
        aux = aux_ref[...]                                   # (3, N)
        b, gamma, beta = aux[0:1, :], aux[1:2, :], aux[2:3, :]
        z = jnp.dot(h, w_ref[...], preferred_element_type=jnp.float32) + b
        mu = jnp.mean(z, axis=0, keepdims=True)
        var = jnp.mean((z - mu) ** 2, axis=0, keepdims=True)  # biased var (torch train mode)
        scale = gamma * lax.rsqrt(var + BN_EPS)                # (1, N) row math: cheap
        shift = beta - mu * scale                              # (1, N)
        return jnp.maximum(z * scale + shift, 0.0)             # one FMA + relu per element

    x = x_ref[...]
    h = lin_bn_relu(x, we_ref, auxe_ref)
    lat = lin_bn_relu(h, wl_ref, auxl_ref)
    dec = lin_bn_relu(lat, wd_ref, auxd_ref)

    # output head: Linear -> ReLU (torch output_layer has batchnorm=False)
    zo = jnp.dot(dec, wo_ref[...], preferred_element_type=jnp.float32) + bo_ref[...]
    outp = jnp.maximum(zo, 0.0)

    # single packed output slab: [ latent | output ]
    out_ref[:, :lat_dim] = lat
    out_ref[:, lat_dim:] = outp


def autoencoder_forward(x, packed_params):
    """x: (B, D) f32. Returns (latent (B, LAT), output (B, D))."""
    B, D = x.shape
    enc_dim = packed_params["we"].shape[1]
    lat_dim = packed_params["wl"].shape[1]
    dec_dim = packed_params["wd"].shape[1]

    inputs = (
        x.astype(jnp.float32),
        packed_params["we"], packed_params["auxe"],
        packed_params["wl"], packed_params["auxl"],
        packed_params["wd"], packed_params["auxd"],
        packed_params["wo"], packed_params["bo"],
    )

    # advisory cost estimate (tiny kernel; helps XLA scheduling around the call)
    flops = 2 * B * (D * enc_dim + enc_dim * lat_dim + lat_dim * dec_dim + dec_dim * D)
    bytes_accessed = 4 * (
        B * D
        + D * enc_dim + enc_dim * lat_dim + lat_dim * dec_dim + dec_dim * D
        + 3 * (enc_dim + lat_dim + dec_dim) + D
        + B * (lat_dim + D)
    )

    vmem = pl.BlockSpec(memory_space=pltpu.MemorySpace.VMEM)
    packed_out = pl.pallas_call(
        autoencoder_kernel,
        out_shape=jax.ShapeDtypeStruct((B, lat_dim + D), jnp.float32),
        in_specs=[vmem] * len(inputs),
        out_specs=vmem,
        cost_estimate=pl.CostEstimate(
            flops=flops, transcendentals=0, bytes_accessed=bytes_accessed),
    )(*inputs)

    latent = packed_out[:, :lat_dim]
    output = packed_out[:, lat_dim:]
    return latent, output


# ---------------------------------------------------------------------------
# parameter construction / packing
# ---------------------------------------------------------------------------

def _xavier_uniform(key, fan_in, fan_out):
    bound = jnp.sqrt(6.0 / (fan_in + fan_out))
    return jax.random.uniform(key, (fan_in, fan_out), jnp.float32, -bound, bound)


def _linear_bias(key, fan_in, fan_out):
    # torch nn.Linear default bias init: U(-1/sqrt(fan_in), 1/sqrt(fan_in))
    bound = 1.0 / jnp.sqrt(float(fan_in))
    return jax.random.uniform(key, (1, fan_out), jnp.float32, -bound, bound)


def init_params(key, input_dim, enc_dim, latent_dim, dec_dim):
    keys = jax.random.split(key, 8)
    p = {}
    p["we"] = _xavier_uniform(keys[0], input_dim, enc_dim)
    p["be"] = _linear_bias(keys[1], input_dim, enc_dim)
    p["ge"] = jnp.ones((1, enc_dim), jnp.float32)
    p["bte"] = jnp.zeros((1, enc_dim), jnp.float32)

    p["wl"] = _xavier_uniform(keys[2], enc_dim, latent_dim)
    p["bl"] = _linear_bias(keys[3], enc_dim, latent_dim)
    p["gl"] = jnp.ones((1, latent_dim), jnp.float32)
    p["btl"] = jnp.zeros((1, latent_dim), jnp.float32)

    p["wd"] = _xavier_uniform(keys[4], latent_dim, dec_dim)
    p["bd"] = _linear_bias(keys[5], latent_dim, dec_dim)
    p["gd"] = jnp.ones((1, dec_dim), jnp.float32)
    p["btd"] = jnp.zeros((1, dec_dim), jnp.float32)

    p["wo"] = _xavier_uniform(keys[6], dec_dim, input_dim)
    p["bo"] = _linear_bias(keys[7], dec_dim, input_dim)
    return p


def pack_params(p):
    """Pack per-layer (bias, gamma, beta) into one [3, N] aux array -> fewer DMAs."""
    return {
        "we": p["we"], "auxe": jnp.concatenate([p["be"], p["ge"], p["bte"]], axis=0),
        "wl": p["wl"], "auxl": jnp.concatenate([p["bl"], p["gl"], p["btl"]], axis=0),
        "wd": p["wd"], "auxd": jnp.concatenate([p["bd"], p["gd"], p["btd"]], axis=0),
        "wo": p["wo"], "bo": p["bo"],
    }


# ---------------------------------------------------------------------------
# pure-JAX reference (mirrors the torch train-mode forward)
# ---------------------------------------------------------------------------

def reference_forward(x, p):
    def lin_bn_relu(h, w, b, g, bt):
        z = h @ w + b
        mu = jnp.mean(z, axis=0, keepdims=True)
        var = jnp.mean((z - mu) ** 2, axis=0, keepdims=True)
        zn = (z - mu) / jnp.sqrt(var + BN_EPS)
        return jnp.maximum(zn * g + bt, 0.0)

    h = lin_bn_relu(x, p["we"], p["be"], p["ge"], p["bte"])
    lat = lin_bn_relu(h, p["wl"], p["bl"], p["gl"], p["btl"])
    dec = lin_bn_relu(lat, p["wd"], p["bd"], p["gd"], p["btd"])
    out = jnp.maximum(dec @ p["wo"] + p["bo"], 0.0)
    return lat, out


if __name__ == "__main__":
    B, D = 8, 64
    ENC, LAT, DEC = 32, 16, 32

    key = jax.random.PRNGKey(0)
    k_x, k_p = jax.random.split(key, 2)

    x = jax.random.normal(k_x, (B, D), jnp.float32)
    params = init_params(k_p, D, ENC, LAT, DEC)
    packed = pack_params(params)

    latent, output = autoencoder_forward(x, packed)
    jax.block_until_ready((latent, output))

    # correctness check against pure-JAX reference (torch train-mode semantics)
    ref_lat, ref_out = reference_forward(x, params)
    assert jnp.allclose(latent, ref_lat, atol=1e-4, rtol=1e-4)
    assert jnp.allclose(output, ref_out, atol=1e-4, rtol=1e-4)

    # TODO(synk): BatchNorm running-stat updates (a torch train-mode side effect) are not
    # materialized; only the forward outputs (which use batch stats) are produced.
    print("KERNEL_OK")
</pallas_src>

<mosaic_0001>
module attributes {stable_mosaic.version = 11 : i64} {
  func.func @autoencoder_kernel(%arg0: memref<8x64xf32, #tpu.memory_space<vmem>>, %arg1: memref<64x32xf32, #tpu.memory_space<vmem>>, %arg2: memref<3x32xf32, #tpu.memory_space<vmem>>, %arg3: memref<32x16xf32, #tpu.memory_space<vmem>>, %arg4: memref<3x16xf32, #tpu.memory_space<vmem>>, %arg5: memref<16x32xf32, #tpu.memory_space<vmem>>, %arg6: memref<3x32xf32, #tpu.memory_space<vmem>>, %arg7: memref<32x64xf32, #tpu.memory_space<vmem>>, %arg8: memref<1x64xf32, #tpu.memory_space<vmem>>, %arg9: memref<8x80xf32, #tpu.memory_space<vmem>>) attributes {dimension_semantics = [], scalar_prefetch = 0 : i64, scratch_operands = 0 : i64, tpu.core_type = #tpu.core_type<tc>} {
    %c0 = arith.constant 0 : index
    %c0_0 = arith.constant 0 : index
    %0 = vector.load %arg0[%c0, %c0_0] : memref<8x64xf32, #tpu.memory_space<vmem>>, vector<8x64xf32>
    %c0_1 = arith.constant 0 : index
    %c0_2 = arith.constant 0 : index
    %1 = vector.load %arg2[%c0_1, %c0_2] : memref<3x32xf32, #tpu.memory_space<vmem>>, vector<3x32xf32>
    %2 = vector.extract_strided_slice %1 {offsets = [0, 0], sizes = [1, 32], strides = [1, 1]} : vector<3x32xf32> to vector<1x32xf32>
    %3 = vector.extract_strided_slice %1 {offsets = [1, 0], sizes = [1, 32], strides = [1, 1]} : vector<3x32xf32> to vector<1x32xf32>
    %4 = vector.extract_strided_slice %1 {offsets = [2, 0], sizes = [1, 32], strides = [1, 1]} : vector<3x32xf32> to vector<1x32xf32>
    %c0_3 = arith.constant 0 : index
    %c0_4 = arith.constant 0 : index
    %5 = vector.load %arg1[%c0_3, %c0_4] : memref<64x32xf32, #tpu.memory_space<vmem>>, vector<64x32xf32>
    %cst = arith.constant dense<0.000000e+00> : vector<8x32xf32>
    %6 = tpu.matmul %0, %5, %cst {dimension_numbers = #tpu.dot_dimension_numbers<[1], [0], [0], [1], [0, 0, 1, 1], [], []>} : vector<8x64xf32>, vector<64x32xf32>, vector<8x32xf32> -> vector<8x32xf32>
    %7 = vector.broadcast %2 : vector<1x32xf32> to vector<8x32xf32>
    %8 = arith.addf %6, %7 : vector<8x32xf32>
    %cst_5 = arith.constant dense<0.000000e+00> : vector<32xf32>
    %9 = vector.multi_reduction <add>, %8, %cst_5 [0] : vector<8x32xf32> to vector<32xf32>
    %10 = vector.shape_cast %9 : vector<32xf32> to vector<1x32xf32>
    %cst_6 = arith.constant 8.000000e+00 : f32
    %11 = vector.broadcast %cst_6 : f32 to vector<1x32xf32>
    %12 = arith.divf %10, %11 : vector<1x32xf32>
    %13 = vector.broadcast %12 : vector<1x32xf32> to vector<8x32xf32>
    %14 = arith.subf %8, %13 : vector<8x32xf32>
    %15 = arith.mulf %14, %14 : vector<8x32xf32>
    %cst_7 = arith.constant dense<0.000000e+00> : vector<32xf32>
    %16 = vector.multi_reduction <add>, %15, %cst_7 [0] : vector<8x32xf32> to vector<32xf32>
    %17 = vector.shape_cast %16 : vector<32xf32> to vector<1x32xf32>
    %cst_8 = arith.constant 8.000000e+00 : f32
    %18 = vector.broadcast %cst_8 : f32 to vector<1x32xf32>
    %19 = arith.divf %17, %18 : vector<1x32xf32>
    %cst_9 = arith.constant 9.99999974E-6 : f32
    %20 = vector.broadcast %cst_9 : f32 to vector<1x32xf32>
    %21 = arith.addf %19, %20 : vector<1x32xf32>
    %22 = math.rsqrt %21 : vector<1x32xf32>
    %23 = arith.mulf %3, %22 : vector<1x32xf32>
    %24 = arith.mulf %12, %23 : vector<1x32xf32>
    %25 = arith.subf %4, %24 : vector<1x32xf32>
    %26 = vector.broadcast %23 : vector<1x32xf32> to vector<8x32xf32>
    %27 = arith.mulf %8, %26 : vector<8x32xf32>
    %28 = vector.broadcast %25 : vector<1x32xf32> to vector<8x32xf32>
    %29 = arith.addf %27, %28 : vector<8x32xf32>
    %cst_10 = arith.constant 0.000000e+00 : f32
    %30 = vector.broadcast %cst_10 : f32 to vector<8x32xf32>
    %31 = arith.maximumf %29, %30 : vector<8x32xf32>
    %c0_11 = arith.constant 0 : index
    %c0_12 = arith.constant 0 : index
    %32 = vector.load %arg4[%c0_11, %c0_12] : memref<3x16xf32, #tpu.memory_space<vmem>>, vector<3x16xf32>
    %33 = vector.extract_strided_slice %32 {offsets = [0, 0], sizes = [1, 16], strides = [1, 1]} : vector<3x16xf32> to vector<1x16xf32>
    %34 = vector.extract_strided_slice %32 {offsets = [1, 0], sizes = [1, 16], strides = [1, 1]} : vector<3x16xf32> to vector<1x16xf32>
    %35 = vector.extract_strided_slice %32 {offsets = [2, 0], sizes = [1, 16], strides = [1, 1]} : vector<3x16xf32> to vector<1x16xf32>
    %c0_13 = arith.constant 0 : index
    %c0_14 = arith.constant 0 : index
    %36 = vector.load %arg3[%c0_13, %c0_14] : memref<32x16xf32, #tpu.memory_space<vmem>>, vector<32x16xf32>
    %cst_15 = arith.constant dense<0.000000e+00> : vector<8x16xf32>
    %37 = tpu.matmul %31, %36, %cst_15 {dimension_numbers = #tpu.dot_dimension_numbers<[1], [0], [0], [1], [0, 0, 1, 1], [], []>} : vector<8x32xf32>, vector<32x16xf32>, vector<8x16xf32> -> vector<8x16xf32>
    %38 = vector.broadcast %33 : vector<1x16xf32> to vector<8x16xf32>
    %39 = arith.addf %37, %38 : vector<8x16xf32>
    %cst_16 = arith.constant dense<0.000000e+00> : vector<16xf32>
    %40 = vector.multi_reduction <add>, %39, %cst_16 [0] : vector<8x16xf32> to vector<16xf32>
    %41 = vector.shape_cast %40 : vector<16xf32> to vector<1x16xf32>
    %cst_17 = arith.constant 8.000000e+00 : f32
    %42 = vector.broadcast %cst_17 : f32 to vector<1x16xf32>
    %43 = arith.divf %41, %42 : vector<1x16xf32>
    %44 = vector.broadcast %43 : vector<1x16xf32> to vector<8x16xf32>
    %45 = arith.subf %39, %44 : vector<8x16xf32>
    %46 = arith.mulf %45, %45 : vector<8x16xf32>
    %cst_18 = arith.constant dense<0.000000e+00> : vector<16xf32>
    %47 = vector.multi_reduction <add>, %46, %cst_18 [0] : vector<8x16xf32> to vector<16xf32>
    %48 = vector.shape_cast %47 : vector<16xf32> to vector<1x16xf32>
    %cst_19 = arith.constant 8.000000e+00 : f32
    %49 = vector.broadcast %cst_19 : f32 to vector<1x16xf32>
    %50 = arith.divf %48, %49 : vector<1x16xf32>
    %cst_20 = arith.constant 9.99999974E-6 : f32
    %51 = vector.broadcast %cst_20 : f32 to vector<1x16xf32>
    %52 = arith.addf %50, %51 : vector<1x16xf32>
    %53 = math.rsqrt %52 : vector<1x16xf32>
    %54 = arith.mulf %34, %53 : vector<1x16xf32>
    %55 = arith.mulf %43, %54 : vector<1x16xf32>
    %56 = arith.subf %35, %55 : vector<1x16xf32>
    %57 = vector.broadcast %54 : vector<1x16xf32> to vector<8x16xf32>
    %58 = arith.mulf %39, %57 : vector<8x16xf32>
    %59 = vector.broadcast %56 : vector<1x16xf32> to vector<8x16xf32>
    %60 = arith.addf %58, %59 : vector<8x16xf32>
    %cst_21 = arith.constant 0.000000e+00 : f32
    %61 = vector.broadcast %cst_21 : f32 to vector<8x16xf32>
    %62 = arith.maximumf %60, %61 : vector<8x16xf32>
    %c0_22 = arith.constant 0 : index
    %c0_23 = arith.constant 0 : index
    %63 = vector.load %arg6[%c0_22, %c0_23] : memref<3x32xf32, #tpu.memory_space<vmem>>, vector<3x32xf32>
    %64 = vector.extract_strided_slice %63 {offsets = [0, 0], sizes = [1, 32], strides = [1, 1]} : vector<3x32xf32> to vector<1x32xf32>
    %65 = vector.extract_strided_slice %63 {offsets = [1, 0], sizes = [1, 32], strides = [1, 1]} : vector<3x32xf32> to vector<1x32xf32>
    %66 = vector.extract_strided_slice %63 {offsets = [2, 0], sizes = [1, 32], strides = [1, 1]} : vector<3x32xf32> to vector<1x32xf32>
    %c0_24 = arith.constant 0 : index
    %c0_25 = arith.constant 0 : index
    %67 = vector.load %arg5[%c0_24, %c0_25] : memref<16x32xf32, #tpu.memory_space<vmem>>, vector<16x32xf32>
    %cst_26 = arith.constant dense<0.000000e+00> : vector<8x32xf32>
    %68 = tpu.matmul %62, %67, %cst_26 {dimension_numbers = #tpu.dot_dimension_numbers<[1], [0], [0], [1], [0, 0, 1, 1], [], []>} : vector<8x16xf32>, vector<16x32xf32>, vector<8x32xf32> -> vector<8x32xf32>
    %69 = vector.broadcast %64 : vector<1x32xf32> to vector<8x32xf32>
    %70 = arith.addf %68, %69 : vector<8x32xf32>
    %cst_27 = arith.constant dense<0.000000e+00> : vector<32xf32>
    %71 = vector.multi_reduction <add>, %70, %cst_27 [0] : vector<8x32xf32> to vector<32xf32>
    %72 = vector.shape_cast %71 : vector<32xf32> to vector<1x32xf32>
    %cst_28 = arith.constant 8.000000e+00 : f32
    %73 = vector.broadcast %cst_28 : f32 to vector<1x32xf32>
    %74 = arith.divf %72, %73 : vector<1x32xf32>
    %75 = vector.broadcast %74 : vector<1x32xf32> to vector<8x32xf32>
    %76 = arith.subf %70, %75 : vector<8x32xf32>
    %77 = arith.mulf %76, %76 : vector<8x32xf32>
    %cst_29 = arith.constant dense<0.000000e+00> : vector<32xf32>
    %78 = vector.multi_reduction <add>, %77, %cst_29 [0] : vector<8x32xf32> to vector<32xf32>
    %79 = vector.shape_cast %78 : vector<32xf32> to vector<1x32xf32>
    %cst_30 = arith.constant 8.000000e+00 : f32
    %80 = vector.broadcast %cst_30 : f32 to vector<1x32xf32>
    %81 = arith.divf %79, %80 : vector<1x32xf32>
    %cst_31 = arith.constant 9.99999974E-6 : f32
    %82 = vector.broadcast %cst_31 : f32 to vector<1x32xf32>
    %83 = arith.addf %81, %82 : vector<1x32xf32>
    %84 = math.rsqrt %83 : vector<1x32xf32>
    %85 = arith.mulf %65, %84 : vector<1x32xf32>
    %86 = arith.mulf %74, %85 : vector<1x32xf32>
    %87 = arith.subf %66, %86 : vector<1x32xf32>
    %88 = vector.broadcast %85 : vector<1x32xf32> to vector<8x32xf32>
    %89 = arith.mulf %70, %88 : vector<8x32xf32>
    %90 = vector.broadcast %87 : vector<1x32xf32> to vector<8x32xf32>
    %91 = arith.addf %89, %90 : vector<8x32xf32>
    %cst_32 = arith.constant 0.000000e+00 : f32
    %92 = vector.broadcast %cst_32 : f32 to vector<8x32xf32>
    %93 = arith.maximumf %91, %92 : vector<8x32xf32>
    %c0_33 = arith.constant 0 : index
    %c0_34 = arith.constant 0 : index
    %94 = vector.load %arg7[%c0_33, %c0_34] : memref<32x64xf32, #tpu.memory_space<vmem>>, vector<32x64xf32>
    %cst_35 = arith.constant dense<0.000000e+00> : vector<8x64xf32>
    %95 = tpu.matmul %93, %94, %cst_35 {dimension_numbers = #tpu.dot_dimension_numbers<[1], [0], [0], [1], [0, 0, 1, 1], [], []>} : vector<8x32xf32>, vector<32x64xf32>, vector<8x64xf32> -> vector<8x64xf32>
    %c0_36 = arith.constant 0 : index
    %c0_37 = arith.constant 0 : index
    %96 = vector.load %arg8[%c0_36, %c0_37] : memref<1x64xf32, #tpu.memory_space<vmem>>, vector<1x64xf32>
    %97 = vector.broadcast %96 : vector<1x64xf32> to vector<8x64xf32>
    %98 = arith.addf %95, %97 : vector<8x64xf32>
    %cst_38 = arith.constant 0.000000e+00 : f32
    %99 = vector.broadcast %cst_38 : f32 to vector<8x64xf32>
    %100 = arith.maximumf %98, %99 : vector<8x64xf32>
    %c0_39 = arith.constant 0 : index
    %c0_40 = arith.constant 0 : index
    %101 = vector.load %arg9[%c0_39, %c0_40] : memref<8x80xf32, #tpu.memory_space<vmem>>, vector<8x16xf32>
    tpu.vector_store %arg9[%c0_39, %c0_40], %62 {strides = array<i32>} : memref<8x80xf32, #tpu.memory_space<vmem>>, vector<8x16xf32>,
    %c0_41 = arith.constant 0 : index
    %c16 = arith.constant 16 : index
    %102 = vector.load %arg9[%c0_41, %c16] : memref<8x80xf32, #tpu.memory_space<vmem>>, vector<8x64xf32>
    tpu.vector_store %arg9[%c0_41, %c16], %100 {strides = array<i32>} : memref<8x80xf32, #tpu.memory_space<vmem>>, vector<8x64xf32>,
    return
  }
}

</mosaic_0001>

<llo_original>
// kernel: tpu_custom_call.1
$region0: #{tpu_custom_call.1}
  #allocation0 [shape = 'u32[]', space=smem, size = 0x4, offset = 0x4, fixed_abs, tag = 'smem constant byte address 0x4 - core index']
  #allocation1 [shape = 'u32[144,128]{1,0:T(1,128)}', space=vmem, size = 0x12000, scoped, tag = 'internal scratch']
  %s0 = inlined_call_operand.vmem [shape: f32[8,64], index: 0, kind: input, shape index: {}]
  %s1 = inlined_call_operand.vmem [shape: f32[64,32], index: 1, kind: input, shape index: {}]
  %s2 = inlined_call_operand.vmem [shape: f32[3,32], index: 2, kind: input, shape index: {}]
  %s3 = inlined_call_operand.vmem [shape: f32[32,16], index: 3, kind: input, shape index: {}]
  %s4 = inlined_call_operand.vmem [shape: f32[3,16], index: 4, kind: input, shape index: {}]
  %s5 = inlined_call_operand.vmem [shape: f32[16,32], index: 5, kind: input, shape index: {}]
  %s6 = inlined_call_operand.vmem [shape: f32[3,32], index: 6, kind: input, shape index: {}]
  %s7 = inlined_call_operand.vmem [shape: f32[32,64], index: 7, kind: input, shape index: {}]
  %s8 = inlined_call_operand.vmem [shape: f32[1,64], index: 8, kind: input, shape index: {}]
  %s9 = inlined_call_operand.hbm [shape: f32[8,80], index: 9, kind: output, shape index: {}]
  %s10 = sld [smem:[#allocation0]]
  $region46: #{tpu_custom_call.1} parent=0
    _
  %s12 = ssub.s32 1, %s10
  %s13 = scalar_select 0, %s12, %s10
  $region1: #{tpu_custom_call.1} parent=0
    #allocation2 [shape = 'u8[4096]{0}', space=vmem, size = 0x1000, scoped, tag = 'output window, operand 0, single buffered']
    #allocation3 [shape = 's32[1]{0}', space=sflag, size = 0x4, scoped, tag = 'scoped memory for tpu_custom_call.1']
    %14 = vsyncpa [#allocation3], 0
    // Predicated region
    $region2: #{tpu_custom_call.1} parent=1 // pred_check
      _
    $region3: #{tpu_custom_call.1} parent=1 // pred_check_branch
      %16 = sbr.rel (0) target = $region5
    $region4: #{tpu_custom_call.1} parent=1 // pred_region
      _
    $region5: #{tpu_custom_call.1} parent=1 // pred_fallthru
      _
    // Predicated region
    $region6: #{tpu_custom_call.1} parent=1 // pred_check
      _
    $region7: #{tpu_custom_call.1} parent=1 // pred_check_branch
      %18 = sbr.rel (0) target = $region9
    $region8: #{tpu_custom_call.1} parent=1 // pred_region
      _
    $region9: #{tpu_custom_call.1} parent=1 // pred_fallthru
      _
    // Predicated region
    $region10: #{tpu_custom_call.1} parent=1 // pred_check
      _
    $region11: #{tpu_custom_call.1} parent=1 // pred_check_branch
      %20 = sbr.rel (0) target = $region13
    $region12: #{tpu_custom_call.1} parent=1 // pred_region
      _
    $region13: #{tpu_custom_call.1} parent=1 // pred_fallthru
      _
    // Predicated region
    $region14: #{tpu_custom_call.1} parent=1 // pred_check
      _
    $region15: #{tpu_custom_call.1} parent=1 // pred_check_branch
      %22 = sbr.rel (0) target = $region17
    $region16: #{tpu_custom_call.1} parent=1 // pred_region
      _
    $region17: #{tpu_custom_call.1} parent=1 // pred_fallthru
      _
    // Predicated region
    $region18: #{tpu_custom_call.1} parent=1 // pred_check
      _
    $region19: #{tpu_custom_call.1} parent=1 // pred_check_branch
      %24 = sbr.rel (0) target = $region21
    $region20: #{tpu_custom_call.1} parent=1 // pred_region
      _
    $region21: #{tpu_custom_call.1} parent=1 // pred_fallthru
      _
    // Predicated region
    $region22: #{tpu_custom_call.1} parent=1 // pred_check
      _
    $region23: #{tpu_custom_call.1} parent=1 // pred_check_branch
      %26 = sbr.rel (0) target = $region25
    $region24: #{tpu_custom_call.1} parent=1 // pred_region
      _
    $region25: #{tpu_custom_call.1} parent=1 // pred_fallthru
      _
    // Predicated region
    $region26: #{tpu_custom_call.1} parent=1 // pred_check
      _
    $region27: #{tpu_custom_call.1} parent=1 // pred_check_branch
      %28 = sbr.rel (0) target = $region29
    $region28: #{tpu_custom_call.1} parent=1 // pred_region
      _
    $region29: #{tpu_custom_call.1} parent=1 // pred_fallthru
      _
    // Predicated region
    $region30: #{tpu_custom_call.1} parent=1 // pred_check
      _
    $region31: #{tpu_custom_call.1} parent=1 // pred_check_branch
      %30 = sbr.rel (0) target = $region33
    $region32: #{tpu_custom_call.1} parent=1 // pred_region
      _
    $region33: #{tpu_custom_call.1} parent=1 // pred_fallthru
      _
    // Predicated region
    $region34: #{tpu_custom_call.1} parent=1 // pred_check
      _
    $region35: #{tpu_custom_call.1} parent=1 // pred_check_branch
      %32 = sbr.rel (0) target = $region37
    $region36: #{tpu_custom_call.1} parent=1 // pred_region
      _
    $region37: #{tpu_custom_call.1} parent=1 // pred_fallthru
      _
    %v33 = vld [vmem:[%s0] sm:$0xff]
    %v34 = vld [vmem:[%s2] sm:$0x7]
    %v35 = vld [vmem:[%s1] sm:$0xff]
    %v36 = vld [vmem:[%s1 + $0x8] sm:$0xff]
    %v37 = vld [vmem:[%s1 + $0x10] sm:$0xff]
    %v38 = vld [vmem:[%s1 + $0x18] sm:$0xff]
    %v39 = vld [vmem:[%s1 + $0x20] sm:$0xff]
    %v40 = vld [vmem:[%s1 + $0x28] sm:$0xff]
    %v41 = vld [vmem:[%s1 + $0x30] sm:$0xff]
    %v42 = vld [vmem:[%s1 + $0x38] sm:$0xff]
    %v43 = vlaneseq
    %v44 = vshrl.u32 %v43, 7
    %v45 = vsub.s32 0, %v44
    %v46 = vrot.slane %v34, %v45
    %vm47 = vcmask 523264
    %v49 = vsel %vm47, %v33, 0
    %51 = vmatprep.subr.mxu0 0.0
    %52 = vmatpush1.msra.mxu0 0.0
    %53 = vmatprep.subr.mxu0 0.0
    %54 = vmatpush1.msra.mxu0 0.0
    %55 = vmatprep.subr.mxu0 0.0
    %56 = vmatpush1.msra.mxu0 0.0
    %57 = vmatprep.subr.mxu0 0.0
    %58 = vmatpush1.msra.mxu0 0.0
    %59 = vmatprep.subr.mxu0 0.0
    %60 = vmatpush1.msra.mxu0 0.0
    %61 = vmatprep.subr.mxu0 0.0
    %62 = vmatpush1.msra.mxu0 0.0
    %63 = vmatprep.subr.mxu0 0.0
    %64 = vmatpush1.msra.mxu0 0.0
    %65 = vmatprep.subr.mxu0 0.0
    %66 = vmatpush1.msra.mxu0 0.0
    %67 = vmatprep.subr.mxu0 0.0
    %68 = vmatpush1.msra.mxu0 %v42
    %69 = vmatprep.subr.mxu0 0.0
    %70 = vmatpush1.msra.mxu0 %v41
    %71 = vmatprep.subr.mxu0 0.0
    %72 = vmatpush1.msra.mxu0 %v40
    %73 = vmatprep.subr.mxu0 0.0
    %74 = vmatpush1.msra.mxu0 %v39
    %75 = vmatprep.subr.mxu0 0.0
    %76 = vmatpush1.msra.mxu0 %v38
    %77 = vmatprep.subr.mxu0 0.0
    %78 = vmatpush1.msra.mxu0 %v37
    %79 = vmatprep.subr.mxu0 0.0
    %80 = vmatpush1.msra.mxu0 %v36
    %81 = vmatprep.subr.mxu0 0.0
    %82 = vmatpush1.msra.mxu0 %v35
    %83 = vmatprep.subr.mxu0 0.0
    %84 = vmatpush2.msra.mxu0 0.0
    %85 = vmatprep.subr.mxu0 0.0
    %86 = vmatpush2.msra.mxu0 0.0
    %87 = vmatprep.subr.mxu0 0.0
    %88 = vmatpush2.msra.mxu0 0.0
    %89 = vmatprep.subr.mxu0 0.0
    %90 = vmatpush2.msra.mxu0 0.0
    %91 = vmatprep.subr.mxu0 0.0
    %92 = vmatpush2.msra.mxu0 0.0
    %93 = vmatprep.subr.mxu0 0.0
    %94 = vmatpush2.msra.mxu0 0.0
    %95 = vmatprep.subr.mxu0 0.0
    %96 = vmatpush2.msra.mxu0 0.0
    %97 = vmatprep.subr.mxu0 0.0
    %98 = vmatpush2.msra.mxu0 0.0
    %99 = vmatprep.subr.mxu0 0.0
    %100 = vmatpush2.msra.mxu0 0.0
    %101 = vmatprep.subr.mxu0 0.0
    %102 = vmatpush2.msra.mxu0 0.0
    %103 = vmatprep.subr.mxu0 0.0
    %104 = vmatpush2.msra.mxu0 0.0
    %105 = vmatprep.subr.mxu0 0.0
    %106 = vmatpush2.msra.mxu0 0.0
    %107 = vmatprep.subr.mxu0 0.0
    %108 = vmatpush2.msra.mxu0 0.0
    %109 = vmatprep.subr.mxu0 0.0
    %110 = vmatpush2.msra.mxu0 0.0
    %111 = vmatprep.subr.mxu0 0.0
    %112 = vmatpush2.msra.mxu0 0.0
    %113 = vmatprep.subr.mxu0 0.0
    %114 = vmatpush2.msra.mxu0 0.0
    %115 = vmatprep.mubr.f32.mxu0 0.0
    %116 = vmatmul.mubr.f32.gmra.mxu0 %v49
    %v117 = vpop.f32.mrf.mxu0
    %v118 = vadd.f32 %v46, %v117
    %v119 = vpop.f32.mrf.mxu0
    %120 = vdwg.mxu0
    %vm121 = vcmask 261120
    %v122 = vsel %vm121, %v118, 0.0
    %v123 = vrot.slane %v122, 4
    %v124 = vadd.f32 %v122, %v123
    %v125 = vrot.slane %v124, 2
    %v126 = vadd.f32 %v124, %v125
    %v127 = vrot.slane %v126, 1
    %v128 = vadd.f32 %v126, %v127
    %v129 = vrcp.pop 8.0
    %v130 = vmul.f32 %v128, %v129
    %v131 = vsub.f32 %v118, %v130
    %v132 = vmul.f32 %v131, %v131
    %v133 = vsel %vm121, %v132, 0.0
    %v134 = vrot.slane %v133, 4
    %v135 = vadd.f32 %v133, %v134
    %v136 = vrot.slane %v135, 2
    %v137 = vadd.f32 %v135, %v136
    %v138 = vrot.slane %v137, 1
    %v139 = vadd.f32 %v137, %v138
    %v140 = vmul.f32 %v139, %v129
    %v141 = vadd.f32 %v140, 1e-05
    %v142 = vrsqrt.pop %v141
    %v143 = vmul.f32 %v34, %v142
    %v144 = vmul.f32 %v130, %v143
    %v146 = vrot.slane %v144, 7
    %v148 = vsub.f32 %v34, %v146
    %v149 = vlaneseq
    %v150 = vshrl.u32 %v149, 7
    %v151 = vsub.s32 1, %v150
    %v152 = vrot.slane %v143, %v151
    %v153 = vmul.f32 %v118, %v152
    %v154 = vlaneseq
    %v155 = vshrl.u32 %v154, 7
    %v156 = vsub.s32 2, %v155
    %v157 = vrot.slane %v148, %v156
    %v158 = vadd.f32 %v153, %v157
    %v159 = vmax.f32 %v158, 0.0
    %v160 = vld [vmem:[%s4] sm:$0x7]
    %v161 = vld [vmem:[%s3] sm:$0xff]
    %v162 = vld [vmem:[%s3 + $0x8] sm:$0xff]
    %v163 = vld [vmem:[%s3 + $0x10] sm:$0xff]
    %v164 = vld [vmem:[%s3 + $0x18] sm:$0xff]
    %v165 = vlaneseq
    %v166 = vshrl.u32 %v165, 7
    %v167 = vsub.s32 0, %v166
    %v168 = vrot.slane %v160, %v167
    %v170 = vsel %vm121, %v159, 0
    %172 = vmatprep.subr.mxu0 0.0
    %173 = vmatpush1.msra.mxu0 0.0
    %174 = vmatprep.subr.mxu0 0.0
    %175 = vmatpush1.msra.mxu0 0.0
    %176 = vmatprep.subr.mxu0 0.0
    %177 = vmatpush1.msra.mxu0 0.0
    %178 = vmatprep.subr.mxu0 0.0
    %179 = vmatpush1.msra.mxu0 0.0
    %180 = vmatprep.subr.mxu0 0.0
    %181 = vmatpush1.msra.mxu0 0.0
    %182 = vmatprep.subr.mxu0 0.0
    %183 = vmatpush1.msra.mxu0 0.0
    %184 = vmatprep.subr.mxu0 0.0
    %185 = vmatpush1.msra.mxu0 0.0
    %186 = vmatprep.subr.mxu0 0.0
    %187 = vmatpush1.msra.mxu0 0.0
    %188 = vmatprep.subr.mxu0 0.0
    %189 = vmatpush1.msra.mxu0 0.0
    %190 = vmatprep.subr.mxu0 0.0
    %191 = vmatpush1.msra.mxu0 0.0
    %192 = vmatprep.subr.mxu0 0.0
    %193 = vmatpush1.msra.mxu0 0.0
    %194 = vmatprep.subr.mxu0 0.0
    %195 = vmatpush1.msra.mxu0 0.0
    %196 = vmatprep.subr.mxu0 0.0
    %197 = vmatpush1.msra.mxu0 %v164
    %198 = vmatprep.subr.mxu0 0.0
    %199 = vmatpush1.msra.mxu0 %v163
    %200 = vmatprep.subr.mxu0 0.0
    %201 = vmatpush1.msra.mxu0 %v162
    %202 = vmatprep.subr.mxu0 0.0
    %203 = vmatpush1.msra.mxu0 %v161
    %204 = vmatprep.subr.mxu0 0.0
    %205 = vmatpush2.msra.mxu0 0.0
    %206 = vmatprep.subr.mxu0 0.0
    %207 = vmatpush2.msra.mxu0 0.0
    %208 = vmatprep.subr.mxu0 0.0
    %209 = vmatpush2.msra.mxu0 0.0
    %210 = vmatprep.subr.mxu0 0.0
    %211 = vmatpush2.msra.mxu0 0.0
    %212 = vmatprep.subr.mxu0 0.0
    %213 = vmatpush2.msra.mxu0 0.0
    %214 = vmatprep.subr.mxu0 0.0
    %215 = vmatpush2.msra.mxu0 0.0
    %216 = vmatprep.subr.mxu0 0.0
    %217 = vmatpush2.msra.mxu0 0.0
    %218 = vmatprep.subr.mxu0 0.0
    %219 = vmatpush2.msra.mxu0 0.0
    %220 = vmatprep.subr.mxu0 0.0
    %221 = vmatpush2.msra.mxu0 0.0
    %222 = vmatprep.subr.mxu0 0.0
    %223 = vmatpush2.msra.mxu0 0.0
    %224 = vmatprep.subr.mxu0 0.0
    %225 = vmatpush2.msra.mxu0 0.0
    %226 = vmatprep.subr.mxu0 0.0
    %227 = vmatpush2.msra.mxu0 0.0
    %228 = vmatprep.subr.mxu0 0.0
    %229 = vmatpush2.msra.mxu0 0.0
    %230 = vmatprep.subr.mxu0 0.0
    %231 = vmatpush2.msra.mxu0 0.0
    %232 = vmatprep.subr.mxu0 0.0
    %233 = vmatpush2.msra.mxu0 0.0
    %234 = vmatprep.subr.mxu0 0.0
    %235 = vmatpush2.msra.mxu0 0.0
    %236 = vmatprep.mubr.f32.mxu0 0.0
    %237 = vmatmul.mubr.f32.gmra.mxu0 %v170
    %v238 = vpop.f32.mrf.mxu0
    %v239 = vadd.f32 %v168, %v238
    %v240 = vpop.f32.mrf.mxu0
    %241 = vdwg.mxu0
    %vm242 = vcmask 130048
    %v243 = vsel %vm242, %v239, 0.0
    %v244 = vrot.slane %v243, 4
    %v245 = vadd.f32 %v243, %v244
    %v246 = vrot.slane %v245, 2
    %v247 = vadd.f32 %v245, %v246
    %v248 = vrot.slane %v247, 1
    %v249 = vadd.f32 %v247, %v248
    %v250 = vmul.f32 %v249, %v129
    %v251 = vsub.f32 %v239, %v250
    %v252 = vmul.f32 %v251, %v251
    %v253 = vsel %vm242, %v252, 0.0
    %v254 = vrot.slane %v253, 4
    %v255 = vadd.f32 %v253, %v254
    %v256 = vrot.slane %v255, 2
    %v257 = vadd.f32 %v255, %v256
    %v258 = vrot.slane %v257, 1
    %v259 = vadd.f32 %v257, %v258
    %v260 = vmul.f32 %v259, %v129
    %v261 = vadd.f32 %v260, 1e-05
    %v262 = vrsqrt.pop %v261
    %v263 = vmul.f32 %v160, %v262
    %v264 = vmul.f32 %v250, %v263
    %v266 = vrot.slane %v264, 7
    %v268 = vsub.f32 %v160, %v266
    %v269 = vlaneseq
    %v270 = vshrl.u32 %v269, 7
    %v271 = vsub.s32 1, %v270
    %v272 = vrot.slane %v263, %v271
    %v273 = vmul.f32 %v239, %v272
    %v274 = vlaneseq
    %v275 = vshrl.u32 %v274, 7
    %v276 = vsub.s32 2, %v275
    %v277 = vrot.slane %v268, %v276
    %v278 = vadd.f32 %v273, %v277
    %v279 = vmax.f32 %v278, 0.0
    %v280 = vld [vmem:[%s6] sm:$0x7]
    %v281 = vld [vmem:[%s5] sm:$0xff]
    %v282 = vld [vmem:[%s5 + $0x8] sm:$0xff]
    %v283 = vlaneseq
    %v284 = vshrl.u32 %v283, 7
    %v285 = vsub.s32 0, %v284
    %v286 = vrot.slane %v280, %v285
    %v288 = vsel %vm242, %v279, 0
    %290 = vmatprep.subr.mxu0 0.0
    %291 = vmatpush1.msra.mxu0 0.0
    %292 = vmatprep.subr.mxu0 0.0
    %293 = vmatpush1.msra.mxu0 0.0
    %294 = vmatprep.subr.mxu0 0.0
    %295 = vmatpush1.msra.mxu0 0.0
    %296 = vmatprep.subr.mxu0 0.0
    %297 = vmatpush1.msra.mxu0 0.0
    %298 = vmatprep.subr.mxu0 0.0
    %299 = vmatpush1.msra.mxu0 0.0
    %300 = vmatprep.subr.mxu0 0.0
    %301 = vmatpush1.msra.mxu0 0.0
    %302 = vmatprep.subr.mxu0 0.0
    %303 = vmatpush1.msra.mxu0 0.0
    %304 = vmatprep.subr.mxu0 0.0
    %305 = vmatpush1.msra.mxu0 0.0
    %306 = vmatprep.subr.mxu0 0.0
    %307 = vmatpush1.msra.mxu0 0.0
    %308 = vmatprep.subr.mxu0 0.0
    %309 = vmatpush1.msra.mxu0 0.0
    %310 = vmatprep.subr.mxu0 0.0
    %311 = vmatpush1.msra.mxu0 0.0
    %312 = vmatprep.subr.mxu0 0.0
    %313 = vmatpush1.msra.mxu0 0.0
    %314 = vmatprep.subr.mxu0 0.0
    %315 = vmatpush1.msra.mxu0 0.0
    %316 = vmatprep.subr.mxu0 0.0
    %317 = vmatpush1.msra.mxu0 0.0
    %318 = vmatprep.subr.mxu0 0.0
    %319 = vmatpush1.msra.mxu0 %v282
    %320 = vmatprep.subr.mxu0 0.0
    %321 = vmatpush1.msra.mxu0 %v281
    %322 = vmatprep.subr.mxu0 0.0
    %323 = vmatpush2.msra.mxu0 0.0
    %324 = vmatprep.subr.mxu0 0.0
    %325 = vmatpush2.msra.mxu0 0.0
    %326 = vmatprep.subr.mxu0 0.0
    %327 = vmatpush2.msra.mxu0 0.0
    %328 = vmatprep.subr.mxu0 0.0
    %329 = vmatpush2.msra.mxu0 0.0
    %330 = vmatprep.subr.mxu0 0.0
    %331 = vmatpush2.msra.mxu0 0.0
    %332 = vmatprep.subr.mxu0 0.0
    %333 = vmatpush2.msra.mxu0 0.0
    %334 = vmatprep.subr.mxu0 0.0
    %335 = vmatpush2.msra.mxu0 0.0
    %336 = vmatprep.subr.mxu0 0.0
    %337 = vmatpush2.msra.mxu0 0.0
    %338 = vmatprep.subr.mxu0 0.0
    %339 = vmatpush2.msra.mxu0 0.0
    %340 = vmatprep.subr.mxu0 0.0
    %341 = vmatpush2.msra.mxu0 0.0
    %342 = vmatprep.subr.mxu0 0.0
    %343 = vmatpush2.msra.mxu0 0.0
    %344 = vmatprep.subr.mxu0 0.0
    %345 = vmatpush2.msra.mxu0 0.0
    %346 = vmatprep.subr.mxu0 0.0
    %347 = vmatpush2.msra.mxu0 0.0
    %348 = vmatprep.subr.mxu0 0.0
    %349 = vmatpush2.msra.mxu0 0.0
    %350 = vmatprep.subr.mxu0 0.0
    %351 = vmatpush2.msra.mxu0 0.0
    %352 = vmatprep.subr.mxu0 0.0
    %353 = vmatpush2.msra.mxu0 0.0
    %354 = vmatprep.mubr.f32.mxu0 0.0
    %355 = vmatmul.mubr.f32.gmra.mxu0 %v288
    %v356 = vpop.f32.mrf.mxu0
    %v357 = vadd.f32 %v286, %v356
    %v358 = vpop.f32.mrf.mxu0
    %359 = vdwg.mxu0
    %v360 = vsel %vm121, %v357, 0.0
    %v361 = vrot.slane %v360, 4
    %v362 = vadd.f32 %v360, %v361
    %v363 = vrot.slane %v362, 2
    %v364 = vadd.f32 %v362, %v363
    %v365 = vrot.slane %v364, 1
    %v366 = vadd.f32 %v364, %v365
    %v367 = vmul.f32 %v366, %v129
    %v368 = vsub.f32 %v357, %v367
    %v369 = vmul.f32 %v368, %v368
    %v370 = vsel %vm121, %v369, 0.0
    %v371 = vrot.slane %v370, 4
    %v372 = vadd.f32 %v370, %v371
    %v373 = vrot.slane %v372, 2
    %v374 = vadd.f32 %v372, %v373
    %v375 = vrot.slane %v374, 1
    %v376 = vadd.f32 %v374, %v375
    %v377 = vmul.f32 %v376, %v129
    %v378 = vadd.f32 %v377, 1e-05
    %v379 = vrsqrt.pop %v378
    %v380 = vmul.f32 %v280, %v379
    %v381 = vmul.f32 %v367, %v380
    %v383 = vrot.slane %v381, 7
    %v385 = vsub.f32 %v280, %v383
    %v386 = vlaneseq
    %v387 = vshrl.u32 %v386, 7
    %v388 = vsub.s32 1, %v387
    %v389 = vrot.slane %v380, %v388
    %v390 = vmul.f32 %v357, %v389
    %v391 = vlaneseq
    %v392 = vshrl.u32 %v391, 7
    %v393 = vsub.s32 2, %v392
    %v394 = vrot.slane %v385, %v393
    %v395 = vadd.f32 %v390, %v394
    %v396 = vmax.f32 %v395, 0.0
    %v397 = vld [vmem:[%s7] sm:$0xff]
    %v398 = vld [vmem:[%s7 + $0x8] sm:$0xff]
    %v399 = vld [vmem:[%s7 + $0x10] sm:$0xff]
    %v400 = vld [vmem:[%s7 + $0x18] sm:$0xff]
    %v401 = vld [vmem:[%s8] sm:$0x1]
    %v403 = vlaneseq
    %v404 = vshrl.u32 %v403, 7
    %v405 = vsub.s32 0, %v404
    %v406 = vrot.slane %v401, %v405
    %v409 = vsel %vm121, %v396, 0
    %411 = vmatprep.subr.mxu0 0.0
    %412 = vmatpush1.msra.mxu0 0.0
    %413 = vmatprep.subr.mxu0 0.0
    %414 = vmatpush1.msra.mxu0 0.0
    %415 = vmatprep.subr.mxu0 0.0
    %416 = vmatpush1.msra.mxu0 0.0
    %417 = vmatprep.subr.mxu0 0.0
    %418 = vmatpush1.msra.mxu0 0.0
    %419 = vmatprep.subr.mxu0 0.0
    %420 = vmatpush1.msra.mxu0 0.0
    %421 = vmatprep.subr.mxu0 0.0
    %422 = vmatpush1.msra.mxu0 0.0
    %423 = vmatprep.subr.mxu0 0.0
    %424 = vmatpush1.msra.mxu0 0.0
    %425 = vmatprep.subr.mxu0 0.0
    %426 = vmatpush1.msra.mxu0 0.0
    %427 = vmatprep.subr.mxu0 0.0
    %428 = vmatpush1.msra.mxu0 0.0
    %429 = vmatprep.subr.mxu0 0.0
    %430 = vmatpush1.msra.mxu0 0.0
    %431 = vmatprep.subr.mxu0 0.0
    %432 = vmatpush1.msra.mxu0 0.0
    %433 = vmatprep.subr.mxu0 0.0
    %434 = vmatpush1.msra.mxu0 0.0
    %435 = vmatprep.subr.mxu0 0.0
    %436 = vmatpush1.msra.mxu0 %v400
    %437 = vmatprep.subr.mxu0 0.0
    %438 = vmatpush1.msra.mxu0 %v399
    %439 = vmatprep.subr.mxu0 0.0
    %440 = vmatpush1.msra.mxu0 %v398
    %441 = vmatprep.subr.mxu0 0.0
    %442 = vmatpush1.msra.mxu0 %v397
    %443 = vmatprep.subr.mxu0 0.0
    %444 = vmatpush2.msra.mxu0 0.0
    %445 = vmatprep.subr.mxu0 0.0
    %446 = vmatpush2.msra.mxu0 0.0
    %447 = vmatprep.subr.mxu0 0.0
    %448 = vmatpush2.msra.mxu0 0.0
    %449 = vmatprep.subr.mxu0 0.0
    %450 = vmatpush2.msra.mxu0 0.0
    %451 = vmatprep.subr.mxu0 0.0
    %452 = vmatpush2.msra.mxu0 0.0
    %453 = vmatprep.subr.mxu0 0.0
    %454 = vmatpush2.msra.mxu0 0.0
    %455 = vmatprep.subr.mxu0 0.0
    %456 = vmatpush2.msra.mxu0 0.0
    %457 = vmatprep.subr.mxu0 0.0
    %458 = vmatpush2.msra.mxu0 0.0
    %459 = vmatprep.subr.mxu0 0.0
    %460 = vmatpush2.msra.mxu0 0.0
    %461 = vmatprep.subr.mxu0 0.0
    %462 = vmatpush2.msra.mxu0 0.0
    %463 = vmatprep.subr.mxu0 0.0
    %464 = vmatpush2.msra.mxu0 0.0
    %465 = vmatprep.subr.mxu0 0.0
    %466 = vmatpush2.msra.mxu0 0.0
    %467 = vmatprep.subr.mxu0 0.0
    %468 = vmatpush2.msra.mxu0 0.0
    %469 = vmatprep.subr.mxu0 0.0
    %470 = vmatpush2.msra.mxu0 0.0
    %471 = vmatprep.subr.mxu0 0.0
    %472 = vmatpush2.msra.mxu0 0.0
    %473 = vmatprep.subr.mxu0 0.0
    %474 = vmatpush2.msra.mxu0 0.0
    %475 = vmatprep.mubr.f32.mxu0 0.0
    %476 = vmatmul.mubr.f32.gmra.mxu0 %v409
    %v477 = vpop.f32.mrf.mxu0
    %v478 = vadd.f32 %v406, %v477
    %v479 = vpop.f32.mrf.mxu0
    %480 = vdwg.mxu0
    %v481 = vmax.f32 %v478, 0.0
    %482 = vst.msk [vmem:[#allocation2] sm:$0xff] %vm242, %v279
    %484 = vrot.lane.b32.xlu0 %v481, 16
    %v485 = vpop.permute.xlu0 %484
    %vm487 = vcmask 654464
    %488 = vst.msk [vmem:[#allocation2] sm:$0xff] %vm487, %v485
    // Predicated region
    $region38: #{tpu_custom_call.1} parent=1 // pred_check
      _
    $region39: #{tpu_custom_call.1} parent=1 // pred_check_branch
      %490 = sbr.rel (0) target = $region41
    $region40: #{tpu_custom_call.1} parent=1 // pred_region
      %s492 = ssub.s32 128, 128
      %493 = vsyncadd [#allocation3], %s492
      %s495 = sshll.u32 [#allocation2], 4
      %s496 = int_to_ptr.vmem [resolvable:$true] %s495
      %498 = dma.vmem_to_hbm [thread:$0]  %s496, 128, %s9, [#allocation3]
    $region41: #{tpu_custom_call.1} parent=1 // pred_fallthru
      _
    // Predicated region
    $region42: #{tpu_custom_call.1} parent=1 // pred_check
      _
    $region43: #{tpu_custom_call.1} parent=1 // pred_check_branch
      %500 = sbr.rel (0) target = $region45
    $region44: #{tpu_custom_call.1} parent=1 // pred_region
      %501 = dma.done [#allocation3], 128
    $region45: #{tpu_custom_call.1} parent=1 // pred_fallthru
      _
    %502 = vsyncpa [#allocation3], 1

</llo_original>
